<compile_context>
chip_gen: v6e
topology: v6e:2x2x1
jax: 0.10.0
libtpu: 0.0.40
codegen_flags: <defaults>
</compile_context>

<pallas_src>
import jax
import jax.numpy as jnp
from jax.experimental import pallas as pl
from jax.experimental.pallas import tpu as pltpu


def _skipgram_chunk_kernel(idx_ref, table_ref, out_ref, fbuf, cbuf, sems):
    """Scores TB (focus, context) pairs per grid step.

    idx_ref  : SMEM (2, B_pad) int32      scalar-prefetched word ids
    table_ref: HBM  (V, D)                embedding table (memory_space=ANY)
    out_ref  : VMEM (1, TB) f32           lane-dense log-sigmoid scores
    fbuf/cbuf: VMEM (2*TB, D)             gathered rows, 2 slots (double buffer)
    sems     : DMA semaphores (2, 2)      [stream (focus/ctx), slot]
    """
    c = pl.program_id(0)
    n_chunks = pl.num_programs(0)
    TB = fbuf.shape[0] // 2

    def fetch_chunk(chunk, slot):
        base = chunk * TB
        off = slot * TB

        @pl.loop(0, TB)
        def _start(p):
            f_id = idx_ref[0, base + p]
            c_id = idx_ref[1, base + p]
            pltpu.make_async_copy(table_ref.at[pl.ds(f_id, 1), :],
                                  fbuf.at[pl.ds(off + p, 1), :],
                                  sems.at[0, slot]).start()
            pltpu.make_async_copy(table_ref.at[pl.ds(c_id, 1), :],
                                  cbuf.at[pl.ds(off + p, 1), :],
                                  sems.at[1, slot]).start()

    def wait_chunk(slot):
        off = slot * TB

        @pl.loop(0, TB)
        def _wait(p):
            # Source is only used for shape bookkeeping; the wait blocks on the
            # per-(stream, slot) DMA semaphore for one row's worth of bytes.
            pltpu.make_async_copy(table_ref.at[pl.ds(0, 1), :],
                                  fbuf.at[pl.ds(off + p, 1), :],
                                  sems.at[0, slot]).wait()
            pltpu.make_async_copy(table_ref.at[pl.ds(0, 1), :],
                                  cbuf.at[pl.ds(off + p, 1), :],
                                  sems.at[1, slot]).wait()

    slot = c % 2

    # Prime the pipeline with chunk 0 on the very first step.
    @pl.when(c == 0)
    def _():
        fetch_chunk(0, 0)

    # Prefetch chunk c+1 into the other slot while chunk c lands / computes.
    @pl.when(c + 1 < n_chunks)
    def _():
        fetch_chunk(c + 1, 1 - slot)

    wait_chunk(slot)

    off = pl.multiple_of(slot * TB, 8)
    ef = fbuf[pl.ds(off, TB), :].astype(jnp.float32)   # (TB, D)
    ec = cbuf[pl.ds(off, TB), :].astype(jnp.float32)   # (TB, D)

    # Row dot products: VPU multiply + XLU cross-lane reduce (MXU stays free).
    score = jnp.sum(ef * ec, axis=-1)                  # (TB,) f32

    # Numerically stable logsigmoid: min(x, 0) - log1p(exp(-|x|))
    logsig = jnp.minimum(score, 0.0) - jnp.log1p(jnp.exp(-jnp.abs(score)))
    out_ref[...] = logsig.reshape(1, TB)               # lane-dense store


def _round_up(x, m):
    return ((x + m - 1) // m) * m


def _choose_chunk(batch, d, itemsize, vmem_budget_bytes=8 << 20):
    """Pairs per grid step: multiple of 8, capped by VMEM budget and 512."""
    # 2 streams (focus/ctx) x 2 slots (double buffer) x TB x D x itemsize.
    cap = max(8, (vmem_budget_bytes // (4 * d * itemsize)) // 8 * 8)
    tb = min(512, cap, _round_up(batch, 8))
    if tb >= 128:
        tb = (tb // 128) * 128      # keep the output block a multiple of 128 lanes
    return max(8, tb)


def skipgram_forward(embeddings, focus, context, use_pallas=None):
    """SkipGram forward.

    embeddings: (V, D) float table (f32 or bf16; upcast to f32 in-kernel).
    focus, context: int32 index vectors of shape (B,). B=1 reproduces the
        torch module exactly; B>1 scores B pairs in one launch.
    returns: (B, 1) f32 log-probabilities — (1, 1) for the torch case.
    """
    V, D = embeddings.shape
    focus = jnp.asarray(focus, jnp.int32).reshape(-1)
    context = jnp.asarray(context, jnp.int32).reshape(-1)
    B = focus.shape[0]

    if use_pallas is None:
        use_pallas = B > 1

    if not use_pallas:
        # Single-pair case: a pallas launch + pipeline prologue dwarfs one
        # 128-element dot; a fused XLA expression is strictly faster.
        f = jnp.clip(focus[0], 0, V - 1)
        c = jnp.clip(context[0], 0, V - 1)
        ef = embeddings[f].astype(jnp.float32).reshape(1, -1)
        ec = embeddings[c].astype(jnp.float32).reshape(1, -1)
        score = ef @ ec.T
        return jnp.minimum(score, 0.0) - jnp.log1p(jnp.exp(-jnp.abs(score)))

    itemsize = jnp.dtype(embeddings.dtype).itemsize
    TB = _choose_chunk(B, D, itemsize)
    num_chunks = -(-B // TB)
    B_pad = num_chunks * TB

    # Merged (2, B_pad) int32 scalar-prefetch indices; clamp because in-kernel
    # row gathers are not runtime bounds-checked. Padded pairs gather row 0
    # (their scores are discarded below).
    idx = jnp.clip(jnp.stack([focus, context], axis=0), 0, V - 1)
    idx = jnp.pad(idx, ((0, 0), (0, B_pad - B)))

    grid_spec = pltpu.PrefetchScalarGridSpec(
        num_scalar_prefetch=1,                 # idx -> SMEM, read by the kernel
        grid=(num_chunks,),
        in_specs=[
            # Embedding table stays in HBM; rows are DMA-gathered manually.
            pl.BlockSpec(memory_space=pl.ANY),
        ],
        out_specs=pl.BlockSpec((1, TB), lambda c, idx_ref: (c, 0)),
        scratch_shapes=[
            pltpu.VMEM((2 * TB, D), embeddings.dtype),   # focus rows, 2 slots
            pltpu.VMEM((2 * TB, D), embeddings.dtype),   # context rows, 2 slots
            pltpu.SemaphoreType.DMA((2, 2)),             # [stream, slot]
        ],
    )

    out = pl.pallas_call(
        _skipgram_chunk_kernel,
        out_shape=jax.ShapeDtypeStruct((num_chunks, TB), jnp.float32),
        grid_spec=grid_spec,
        compiler_params=pltpu.CompilerParams(
            # Cross-step prefetch carries VMEM/semaphore state -> sequential.
            dimension_semantics=("arbitrary",)),
    )(idx, embeddings)

    return out.reshape(B_pad, 1)[:B]


if __name__ == "__main__":
    vocab_size = 64
    embd_size = 128

    key = jax.random.PRNGKey(0)
    # Deterministic synthetic "nn.Embedding" weight (torch default: N(0, 1)).
    emb_weight = jax.random.normal(key, (vocab_size, embd_size),
                                   dtype=jnp.float32)

    # --- exact torch-module case: one (focus, context) pair -> (1, 1) ------
    focus = jnp.array([7], dtype=jnp.int32)
    context = jnp.array([42], dtype=jnp.int32)
    ref1 = jax.nn.log_sigmoid(
        emb_weight[focus].reshape(1, -1) @ emb_weight[context].reshape(1, -1).T)

    out1 = jax.block_until_ready(skipgram_forward(emb_weight, focus, context))
    assert out1.shape == (1, 1)
    assert jnp.allclose(out1, ref1, atol=1e-5), (out1, ref1)

    # Same single pair forced through the Pallas kernel (gather + dot in-kernel).
    out1p = jax.block_until_ready(
        skipgram_forward(emb_weight, focus, context, use_pallas=True))
    assert out1p.shape == (1, 1)
    assert jnp.allclose(out1p, ref1, atol=1e-5), (out1p, ref1)

    # --- batched case: two chunks + padding + double-buffer exercised -------
    kf, kc = jax.random.split(jax.random.PRNGKey(1))
    B = 200                       # -> TB=128, 2 chunks, 56 padded pairs
    focus_b = jax.random.randint(kf, (B,), 0, vocab_size, dtype=jnp.int32)
    context_b = jax.random.randint(kc, (B,), 0, vocab_size, dtype=jnp.int32)

    out_b = jax.block_until_ready(skipgram_forward(emb_weight, focus_b, context_b))
    ref_b = jax.nn.log_sigmoid(
        jnp.sum(emb_weight[focus_b] * emb_weight[context_b],
                axis=1, keepdims=True))
    assert out_b.shape == (B, 1)
    assert jnp.allclose(out_b, ref_b, atol=1e-5), (out_b, ref_b)

    # --- tiny batch (< 128) path: TB rounds to 8, single chunk --------------
    out_s = jax.block_until_ready(
        skipgram_forward(emb_weight, focus_b[:5], context_b[:5]))
    assert out_s.shape == (5, 1)
    assert jnp.allclose(out_s, ref_b[:5], atol=1e-5), (out_s, ref_b[:5])

    print("KERNEL_OK")
</pallas_src>

<mosaic_0001>
module attributes {stable_mosaic.version = 11 : i64} {
  func.func @_skipgram_chunk_kernel(%arg0: i32, %arg1: memref<2x8xi32, #tpu.memory_space<smem>>, %arg2: memref<64x128xf32, #tpu.memory_space<any>>, %arg3: memref<1x8xf32, #tpu.memory_space<vmem>>, %arg4: memref<16x128xf32, #tpu.memory_space<vmem>>, %arg5: memref<16x128xf32, #tpu.memory_space<vmem>>, %arg6: memref<2x2x!tpu.dma_semaphore, #tpu.memory_space<semaphore_mem>>) attributes {dimension_semantics = [#tpu.dimension_semantics<arbitrary>], iteration_bounds = array<i64: 1>, scalar_prefetch = 1 : i64, scratch_operands = 3 : i64, tpu.core_type = #tpu.core_type<tc>, window_params = [{}, {transform_indices = @transform_1, window_bounds = array<i64: 1, 8>}]} {
    %c2_i32 = arith.constant 2 : i32
    %c0_i32 = arith.constant 0 : i32
    %0 = arith.cmpi eq, %c2_i32, %c0_i32 : i32
    %c1_i32 = arith.constant 1 : i32
    %1 = arith.select %0, %c1_i32, %c2_i32 : i32
    %2 = arith.remsi %arg0, %1 : i32
    %c0_i32_0 = arith.constant 0 : i32
    %3 = arith.cmpi ne, %2, %c0_i32_0 : i32
    %c0_i32_1 = arith.constant 0 : i32
    %4 = arith.cmpi slt, %2, %c0_i32_1 : i32
    %c0_i32_2 = arith.constant 0 : i32
    %5 = arith.cmpi slt, %1, %c0_i32_2 : i32
    %6 = arith.xori %4, %5 : i1
    %7 = arith.andi %6, %3 : i1
    %8 = arith.addi %2, %1 : i32
    %9 = arith.select %7, %8, %2 : i32
    %c0_i32_3 = arith.constant 0 : i32
    %10 = arith.cmpi eq, %arg0, %c0_i32_3 : i32
    %11 = arith.extui %10 : i1 to i32
    %c0_i32_4 = arith.constant 0 : i32
    %12 = arith.cmpi ne, %11, %c0_i32_4 : i32
    scf.if %12 {
      %c0_i32_18 = arith.constant 0 : i32
      %c8_i32_19 = arith.constant 8 : i32
      %37 = arith.addi %c0_i32_18, %c8_i32_19 : i32
      %c1_i32_20 = arith.constant 1 : i32
      scf.for %arg7 = %c0_i32_18 to %37 step %c1_i32_20  : i32 {
        %c1_i32_22 = arith.constant 1 : i32
        %38 = arith.muli %arg7, %c1_i32_22 : i32
        %c0_i32_23 = arith.constant 0 : i32
        %39 = arith.addi %c0_i32_23, %38 : i32
        %c0_i32_24 = arith.constant 0 : i32
        %40 = arith.addi %c0_i32_24, %39 : i32
        %c0_25 = arith.constant 0 : index
        %41 = arith.index_cast %40 : i32 to index
        %42 = memref.load %arg1[%c0_25, %41] : memref<2x8xi32, #tpu.memory_space<smem>>
        %c0_i32_26 = arith.constant 0 : i32
        %43 = arith.addi %c0_i32_26, %39 : i32
        %c1 = arith.constant 1 : index
        %44 = arith.index_cast %43 : i32 to index
        %45 = memref.load %arg1[%c1, %44] : memref<2x8xi32, #tpu.memory_space<smem>>
        %c0_i32_27 = arith.constant 0 : i32
        %46 = arith.addi %c0_i32_27, %39 : i32
        %c0_i32_28 = arith.constant 0 : i32
        %c0_i32_29 = arith.constant 0 : i32
        %c0_i32_30 = arith.constant 0 : i32
        %47 = tpu.memref_slice %arg2[%42, %c0_i32_30] : memref<64x128xf32, #tpu.memory_space<any>> -> memref<1x128xf32, #tpu.memory_space<any>>
        %c0_i32_31 = arith.constant 0 : i32
        %48 = tpu.memref_slice %arg4[%46, %c0_i32_31] : memref<16x128xf32, #tpu.memory_space<vmem>> -> memref<1x128xf32, #tpu.memory_space<vmem>>
        %49 = tpu.memref_slice %arg6[%c0_i32_28, %c0_i32_29] : memref<2x2x!tpu.dma_semaphore, #tpu.memory_space<semaphore_mem>> -> memref<1x1x!tpu.dma_semaphore, #tpu.memory_space<semaphore_mem>>
        %50 = tpu.memref_squeeze %49 : memref<1x1x!tpu.dma_semaphore, #tpu.memory_space<semaphore_mem>> -> memref<!tpu.dma_semaphore, #tpu.memory_space<semaphore_mem>>
        tpu.enqueue_dma source(%47 : memref<1x128xf32, #tpu.memory_space<any>>) target(%48 : memref<1x128xf32, #tpu.memory_space<vmem>>) target_semaphore(%50 : memref<!tpu.dma_semaphore, #tpu.memory_space<semaphore_mem>>)
        %c0_i32_32 = arith.constant 0 : i32
        %51 = arith.addi %c0_i32_32, %39 : i32
        %c1_i32_33 = arith.constant 1 : i32
        %c0_i32_34 = arith.constant 0 : i32
        %c0_i32_35 = arith.constant 0 : i32
        %52 = tpu.memref_slice %arg2[%45, %c0_i32_35] : memref<64x128xf32, #tpu.memory_space<any>> -> memref<1x128xf32, #tpu.memory_space<any>>
        %c0_i32_36 = arith.constant 0 : i32
        %53 = tpu.memref_slice %arg5[%51, %c0_i32_36] : memref<16x128xf32, #tpu.memory_space<vmem>> -> memref<1x128xf32, #tpu.memory_space<vmem>>
        %54 = tpu.memref_slice %arg6[%c1_i32_33, %c0_i32_34] : memref<2x2x!tpu.dma_semaphore, #tpu.memory_space<semaphore_mem>> -> memref<1x1x!tpu.dma_semaphore, #tpu.memory_space<semaphore_mem>>
        %55 = tpu.memref_squeeze %54 : memref<1x1x!tpu.dma_semaphore, #tpu.memory_space<semaphore_mem>> -> memref<!tpu.dma_semaphore, #tpu.memory_space<semaphore_mem>>
        tpu.enqueue_dma source(%52 : memref<1x128xf32, #tpu.memory_space<any>>) target(%53 : memref<1x128xf32, #tpu.memory_space<vmem>>) target_semaphore(%55 : memref<!tpu.dma_semaphore, #tpu.memory_space<semaphore_mem>>)
      }
      %c8_i32_21 = arith.constant 8 : i32
    } else {
    }
    %c1_i32_5 = arith.constant 1 : i32
    %13 = arith.addi %arg0, %c1_i32_5 : i32
    %c1_i32_6 = arith.constant 1 : i32
    %14 = arith.cmpi slt, %13, %c1_i32_6 : i32
    %15 = arith.extui %14 : i1 to i32
    %c0_i32_7 = arith.constant 0 : i32
    %16 = arith.cmpi ne, %15, %c0_i32_7 : i32
    scf.if %16 {
      %c1_i32_18 = arith.constant 1 : i32
      %37 = arith.addi %arg0, %c1_i32_18 : i32
      %c1_i32_19 = arith.constant 1 : i32
      %38 = arith.subi %c1_i32_19, %9 : i32
      %c8_i32_20 = arith.constant 8 : i32
      %39 = arith.muli %37, %c8_i32_20 : i32
      %c8_i32_21 = arith.constant 8 : i32
      %40 = arith.muli %38, %c8_i32_21 : i32
      %c0_i32_22 = arith.constant 0 : i32
      %c8_i32_23 = arith.constant 8 : i32
      %41 = arith.addi %c0_i32_22, %c8_i32_23 : i32
      %c1_i32_24 = arith.constant 1 : i32
      scf.for %arg7 = %c0_i32_22 to %41 step %c1_i32_24  : i32 {
        %c1_i32_26 = arith.constant 1 : i32
        %42 = arith.muli %arg7, %c1_i32_26 : i32
        %c0_i32_27 = arith.constant 0 : i32
        %43 = arith.addi %c0_i32_27, %42 : i32
        %44 = arith.addi %39, %43 : i32
        %c0_28 = arith.constant 0 : index
        %45 = arith.index_cast %44 : i32 to index
        %46 = memref.load %arg1[%c0_28, %45] : memref<2x8xi32, #tpu.memory_space<smem>>
        %47 = arith.addi %39, %43 : i32
        %c1 = arith.constant 1 : index
        %48 = arith.index_cast %47 : i32 to index
        %49 = memref.load %arg1[%c1, %48] : memref<2x8xi32, #tpu.memory_space<smem>>
        %50 = arith.addi %40, %43 : i32
        %c0_i32_29 = arith.constant 0 : i32
        %c0_i32_30 = arith.constant 0 : i32
        %51 = tpu.memref_slice %arg2[%46, %c0_i32_30] : memref<64x128xf32, #tpu.memory_space<any>> -> memref<1x128xf32, #tpu.memory_space<any>>
        %c0_i32_31 = arith.constant 0 : i32
        %52 = tpu.memref_slice %arg4[%50, %c0_i32_31] : memref<16x128xf32, #tpu.memory_space<vmem>> -> memref<1x128xf32, #tpu.memory_space<vmem>>
        %53 = tpu.memref_slice %arg6[%c0_i32_29, %38] : memref<2x2x!tpu.dma_semaphore, #tpu.memory_space<semaphore_mem>> -> memref<1x1x!tpu.dma_semaphore, #tpu.memory_space<semaphore_mem>>
        %54 = tpu.memref_squeeze %53 : memref<1x1x!tpu.dma_semaphore, #tpu.memory_space<semaphore_mem>> -> memref<!tpu.dma_semaphore, #tpu.memory_space<semaphore_mem>>
        tpu.enqueue_dma source(%51 : memref<1x128xf32, #tpu.memory_space<any>>) target(%52 : memref<1x128xf32, #tpu.memory_space<vmem>>) target_semaphore(%54 : memref<!tpu.dma_semaphore, #tpu.memory_space<semaphore_mem>>)
        %55 = arith.addi %40, %43 : i32
        %c1_i32_32 = arith.constant 1 : i32
        %c0_i32_33 = arith.constant 0 : i32
        %56 = tpu.memref_slice %arg2[%49, %c0_i32_33] : memref<64x128xf32, #tpu.memory_space<any>> -> memref<1x128xf32, #tpu.memory_space<any>>
        %c0_i32_34 = arith.constant 0 : i32
        %57 = tpu.memref_slice %arg5[%55, %c0_i32_34] : memref<16x128xf32, #tpu.memory_space<vmem>> -> memref<1x128xf32, #tpu.memory_space<vmem>>
        %58 = tpu.memref_slice %arg6[%c1_i32_32, %38] : memref<2x2x!tpu.dma_semaphore, #tpu.memory_space<semaphore_mem>> -> memref<1x1x!tpu.dma_semaphore, #tpu.memory_space<semaphore_mem>>
        %59 = tpu.memref_squeeze %58 : memref<1x1x!tpu.dma_semaphore, #tpu.memory_space<semaphore_mem>> -> memref<!tpu.dma_semaphore, #tpu.memory_space<semaphore_mem>>
        tpu.enqueue_dma source(%56 : memref<1x128xf32, #tpu.memory_space<any>>) target(%57 : memref<1x128xf32, #tpu.memory_space<vmem>>) target_semaphore(%59 : memref<!tpu.dma_semaphore, #tpu.memory_space<semaphore_mem>>)
      }
      %c8_i32_25 = arith.constant 8 : i32
    } else {
    }
    %c8_i32 = arith.constant 8 : i32
    %17 = arith.muli %9, %c8_i32 : i32
    %c0_i32_8 = arith.constant 0 : i32
    %c8_i32_9 = arith.constant 8 : i32
    %18 = arith.addi %c0_i32_8, %c8_i32_9 : i32
    %c1_i32_10 = arith.constant 1 : i32
    scf.for %arg7 = %c0_i32_8 to %18 step %c1_i32_10  : i32 {
      %c1_i32_18 = arith.constant 1 : i32
      %37 = arith.muli %arg7, %c1_i32_18 : i32
      %c0_i32_19 = arith.constant 0 : i32
      %38 = arith.addi %c0_i32_19, %37 : i32
      %39 = arith.addi %17, %38 : i32
      %c0_i32_20 = arith.constant 0 : i32
      %c0_i32_21 = arith.constant 0 : i32
      %c0_i32_22 = arith.constant 0 : i32
      %40 = tpu.memref_slice %arg2[%c0_i32_21, %c0_i32_22] : memref<64x128xf32, #tpu.memory_space<any>> -> memref<1x128xf32, #tpu.memory_space<any>>
      %c0_i32_23 = arith.constant 0 : i32
      %41 = tpu.memref_slice %arg4[%39, %c0_i32_23] : memref<16x128xf32, #tpu.memory_space<vmem>> -> memref<1x128xf32, #tpu.memory_space<vmem>>
      %42 = tpu.memref_slice %arg6[%c0_i32_20, %9] : memref<2x2x!tpu.dma_semaphore, #tpu.memory_space<semaphore_mem>> -> memref<1x1x!tpu.dma_semaphore, #tpu.memory_space<semaphore_mem>>
      %43 = tpu.memref_squeeze %42 : memref<1x1x!tpu.dma_semaphore, #tpu.memory_space<semaphore_mem>> -> memref<!tpu.dma_semaphore, #tpu.memory_space<semaphore_mem>>
      tpu.wait_dma2 semaphore(%43 : memref<!tpu.dma_semaphore, #tpu.memory_space<semaphore_mem>>) src(%40 : memref<1x128xf32, #tpu.memory_space<any>>) dst(%41 : memref<1x128xf32, #tpu.memory_space<vmem>>)
      %44 = arith.addi %17, %38 : i32
      %c1_i32_24 = arith.constant 1 : i32
      %c0_i32_25 = arith.constant 0 : i32
      %c0_i32_26 = arith.constant 0 : i32
      %45 = tpu.memref_slice %arg2[%c0_i32_25, %c0_i32_26] : memref<64x128xf32, #tpu.memory_space<any>> -> memref<1x128xf32, #tpu.memory_space<any>>
      %c0_i32_27 = arith.constant 0 : i32
      %46 = tpu.memref_slice %arg5[%44, %c0_i32_27] : memref<16x128xf32, #tpu.memory_space<vmem>> -> memref<1x128xf32, #tpu.memory_space<vmem>>
      %47 = tpu.memref_slice %arg6[%c1_i32_24, %9] : memref<2x2x!tpu.dma_semaphore, #tpu.memory_space<semaphore_mem>> -> memref<1x1x!tpu.dma_semaphore, #tpu.memory_space<semaphore_mem>>
      %48 = tpu.memref_squeeze %47 : memref<1x1x!tpu.dma_semaphore, #tpu.memory_space<semaphore_mem>> -> memref<!tpu.dma_semaphore, #tpu.memory_space<semaphore_mem>>
      tpu.wait_dma2 semaphore(%48 : memref<!tpu.dma_semaphore, #tpu.memory_space<semaphore_mem>>) src(%45 : memref<1x128xf32, #tpu.memory_space<any>>) dst(%46 : memref<1x128xf32, #tpu.memory_space<vmem>>)
    }
    %c8_i32_11 = arith.constant 8 : i32
    %c8_i32_12 = arith.constant 8 : i32
    %19 = arith.muli %9, %c8_i32_12 : i32
    %20 = tpu.assume_multiple %19, 8 : i32
    %21 = arith.index_cast %20 : i32 to index
    %c0 = arith.constant 0 : index
    %22 = vector.load %arg4[%21, %c0] : memref<16x128xf32, #tpu.memory_space<vmem>>, vector<8x128xf32>
    %23 = arith.index_cast %20 : i32 to index
    %c0_13 = arith.constant 0 : index
    %24 = vector.load %arg5[%23, %c0_13] : memref<16x128xf32, #tpu.memory_space<vmem>>, vector<8x128xf32>
    %25 = arith.mulf %22, %24 : vector<8x128xf32>
    %cst = arith.constant dense<0.000000e+00> : vector<8xf32>
    %26 = vector.multi_reduction <add>, %25, %cst [1] : vector<8x128xf32> to vector<8xf32>
    %cst_14 = arith.constant 0.000000e+00 : f32
    %27 = vector.broadcast %cst_14 : f32 to vector<8xf32>
    %28 = arith.minimumf %26, %27 : vector<8xf32>
    %29 = math.absf %26 : vector<8xf32>
    %cst_15 = arith.constant 0.000000e+00 : f32
    %30 = vector.broadcast %cst_15 : f32 to vector<8xf32>
    %31 = arith.subf %30, %29 : vector<8xf32>
    %32 = math.exp %31 : vector<8xf32>
    %33 = math.log1p %32 : vector<8xf32>
    %34 = arith.subf %28, %33 : vector<8xf32>
    %35 = vector.shape_cast %34 : vector<8xf32> to vector<1x8xf32>
    %c0_16 = arith.constant 0 : index
    %c0_17 = arith.constant 0 : index
    %36 = vector.load %arg3[%c0_16, %c0_17] : memref<1x8xf32, #tpu.memory_space<vmem>>, vector<1x8xf32>
    tpu.vector_store %arg3[%c0_16, %c0_17], %35 {strides = array<i32>} : memref<1x8xf32, #tpu.memory_space<vmem>>, vector<1x8xf32>,
    return
  }
  func.func @transform_1(%arg0: i32, %arg1: memref<2x8xi32, #tpu.memory_space<smem>>) -> (i32, i32) {
    %c0_i32 = arith.constant 0 : i32
    %c0_i32_0 = arith.constant 0 : i32
    return %arg0, %c0_i32 : i32, i32
  }
}

</mosaic_0001>

<llo_original>
// kernel: tpu_custom_call.1
$region0: #{tpu_custom_call.1}
  #allocation0 [shape = 'u32[]', space=smem, size = 0x4, offset = 0x4, fixed_abs, tag = 'smem constant byte address 0x4 - core index']
  #allocation1 [shape = 'u32[144,128]{1,0:T(1,128)}', space=vmem, size = 0x12000, scoped, tag = 'internal scratch']
  #allocation2 [shape = 'f32[16,128]{1,0:T(8,128)}', space=vmem, size = 0x2000, scoped, tag = 'scratch operand']
  #allocation3 [shape = 'f32[16,128]{1,0:T(8,128)}', space=vmem, size = 0x2000, scoped, tag = 'scratch operand']
  #allocation4 [shape = 's32[4]{0}', space=sflag, size = 0x10, scoped, tag = 'scratch operand']
  #allocation5 [shape = 's32[1]{0}', space=sflag, size = 0x4, scoped, tag = 'scoped memory for tpu_custom_call.1']
  #allocation6 [shape = 'u8[1024]{0}', space=smem, size = 0x400, scoped, tag = 'prefetched SMEM operand 0']
  #allocation9 [shape = 's32[]', space=sflag, size = 0x4, offset = 0, fixed_abs, tag = 'sflag constant byte address 0x0 - dummy sync flag']
  #allocation10 [shape = 's32[]', space=sflag, size = 0x4, offset = 0, fixed_abs, tag = 'sflag constant byte address 0x0 - dummy sync flag']
  #allocation11 [shape = 'u32[]', space=smem, size = 0x4, offset = 0x44, fixed_abs, tag = 'smem constant byte address 0x44 - assertion arg 0']
  #allocation12 [shape = 'u32[]', space=smem, size = 0x4, offset = 0x48, fixed_abs, tag = 'smem constant byte address 0x48 - assertion arg 1']
  #allocation13 [shape = 's32[]', space=sflag, size = 0x4, offset = 0, fixed_abs, tag = 'sflag constant byte address 0x0 - dummy sync flag']
  #allocation14 [shape = 's32[]', space=sflag, size = 0x4, offset = 0, fixed_abs, tag = 'sflag constant byte address 0x0 - dummy sync flag']
  #allocation15 [shape = 's32[]', space=sflag, size = 0x4, offset = 0, fixed_abs, tag = 'sflag constant byte address 0x0 - dummy sync flag']
  #allocation16 [shape = 's32[]', space=sflag, size = 0x4, offset = 0, fixed_abs, tag = 'sflag constant byte address 0x0 - dummy sync flag']
  #allocation17 [shape = 's32[]', space=sflag, size = 0x4, offset = 0, fixed_abs, tag = 'sflag constant byte address 0x0 - dummy sync flag']
  #allocation18 [shape = 's32[]', space=sflag, size = 0x4, offset = 0, fixed_abs, tag = 'sflag constant byte address 0x0 - dummy sync flag']
  %s0 = inlined_call_operand.hbm [shape: s32[2,8], index: 0, kind: input, shape index: {}]
  %s1 = inlined_call_operand.hbm [shape: f32[64,128], index: 1, kind: input, shape index: {}]
  %s2 = inlined_call_operand.hbm [shape: f32[1,8], index: 2, kind: output, shape index: {}]
  %s3 = sld [smem:[#allocation0]]
  $region55: #{tpu_custom_call.1} parent=0
    _
  %s5 = ssub.s32 1, %s3
  %s6 = scalar_select 0, %s5, %s3
  %8 = dma.hbm_to_smem %s0, 32, [#allocation6], [#allocation5]
  %9 = dma.done [#allocation5], 32
  %10 = sfence
  $region1: #{tpu_custom_call.1} parent=0
    #allocation7 [shape = 'u8[512]{0}', space=vmem, size = 0x400, scoped, tag = 'output window, operand 0, single buffered']
    #allocation8 [shape = 's32[1]{0}', space=sflag, size = 0x4, scoped, tag = 'scoped memory for tpu_custom_call.1']
    %11 = vsyncpa [#allocation8], 0
    %s12 = ssub.s32 0, 0
    %s13 = ssub.s32 0, 0
    %p14 = scmp.ne.s32.totalorder 0, 0
    %p15 = scmp.lt.s32.totalorder 0, 0
    %p16 = pnand %p15, %p14
    %p17 = pneg %p16
    %s18 = sadd.s32 0, 2
    %s19 = scalar_select %p17, %s18, 0
    %p20 = scmp.eq.s32.totalorder 0, 0
    // Predicated region
    $region2: #{tpu_custom_call.1} parent=1 // pred_check
      %p21 = pneg %p20
    $region3: #{tpu_custom_call.1} parent=1 // pred_check_branch
      %23 = sbr.rel (%p21) target = $region5
    $region4: #{tpu_custom_call.1} parent=1 // pred_region
      loop: start=0, step=1, limit=8
      $region6: #{tpu_custom_call.1} parent=4 // loop_pre_header
        _
      $region7: #{tpu_custom_call.1} parent=4 // loop_header
        %s25 = sphi 0, %s29
        %p26 = scmp.ge.s32.totalorder %s25, 8
      $region8: #{tpu_custom_call.1} parent=4 // loop_header_branch
        %28 = sbr.rel (%p26) target = $region12
      $region9: #{tpu_custom_call.1} parent=4 // loop_body
        %s30 = sld [smem:[#allocation6 + %s25]]
        %s31 = sshra.s32 %s25, 7
        %s32 = sand.u32 %s25, 127
        %s33 = sadd.s32 %s31, 1
        %s34 = smul.u32 %s33, 128
        %s35 = sshra.s32 %s25, 7
        %s36 = sand.u32 %s25, 127
        %s37 = sadd.s32 %s34, %s36
        %s38 = sld [smem:[#allocation6 + %s37]]
        %s39 = smul.addr %s30, 16
        %s40 = scalar_lea.hbm %s1, %s39
        %s41 = scalar_lea.vmem [#allocation2], %s25
        // Predicated region
        $region13: #{tpu_custom_call.1} parent=9 // pred_check
          _
        $region14: #{tpu_custom_call.1} parent=9 // pred_check_branch
          %43 = sbr.rel target = $region16
        $region15: #{tpu_custom_call.1} parent=9 // pred_region
          %44 = sst [smem:[#allocation11]] [#allocation10]
          %45 = sst [smem:[#allocation12]] [#allocation9]
        $region16: #{tpu_custom_call.1} parent=9 // pred_fallthru
          _
        %47 = shalt.err (0)
        %s49 = sshll.u32 %s41, 4
        %s50 = int_to_ptr.vmem [resolvable:$true] %s49
        %52 = dma.hbm_to_vmem [thread:$0]  %s40, 16, %s50, [#allocation4]
        %s53 = smul.addr %s38, 16
        %s54 = scalar_lea.hbm %s1, %s53
        %s55 = scalar_lea.vmem [#allocation3], %s25
        %s56 = scalar_lea.sflag [#allocation4], 2
        // Predicated region
        $region17: #{tpu_custom_call.1} parent=9 // pred_check
          _
        $region18: #{tpu_custom_call.1} parent=9 // pred_check_branch
          %58 = sbr.rel target = $region20
        $region19: #{tpu_custom_call.1} parent=9 // pred_region
          %59 = sst [smem:[#allocation11]] [#allocation14]
          %60 = sst [smem:[#allocation12]] [#allocation13]
        $region20: #{tpu_custom_call.1} parent=9 // pred_fallthru
          _
        %62 = shalt.err (0)
        %s64 = sshll.u32 %s55, 4
        %s65 = int_to_ptr.vmem [resolvable:$true] %s64
        %67 = dma.hbm_to_vmem [thread:$0]  %s54, 16, %s65, %s56
      $region10: #{tpu_custom_call.1} parent=4 // loop_footer
        %s29 = sadd.s32 1, %s25
      $region11: #{tpu_custom_call.1} parent=4 // loop_footer_branch
        %24 = sbr.rel target = $region7
      $region12: #{tpu_custom_call.1} parent=4 // loop_exit
        _
    $region5: #{tpu_custom_call.1} parent=1 // pred_fallthru
      _
    %s68 = sadd.s32 0, 1
    %p69 = scmp.lt.s32.totalorder %s68, 1
    // Predicated region
    $region21: #{tpu_custom_call.1} parent=1 // pred_check
      %p70 = pneg %p69
    $region22: #{tpu_custom_call.1} parent=1 // pred_check_branch
      %72 = sbr.rel (%p70) target = $region24
    $region23: #{tpu_custom_call.1} parent=1 // pred_region
      %s73 = ssub.s32 1, %s19
      %s74 = smul.u32 %s68, 8
      %s75 = smul.u32 %s73, 8
      loop: start=0, step=1, limit=8
      $region25: #{tpu_custom_call.1} parent=23 // loop_pre_header
        _
      $region26: #{tpu_custom_call.1} parent=23 // loop_header
        %s77 = sphi 0, %s81
        %p78 = scmp.ge.s32.totalorder %s77, 8
      $region27: #{tpu_custom_call.1} parent=23 // loop_header_branch
        %80 = sbr.rel (%p78) target = $region31
      $region28: #{tpu_custom_call.1} parent=23 // loop_body
        %s82 = sadd.s32 %s74, %s77
        %s83 = sld [smem:[#allocation6 + %s82]]
        %s84 = sshra.s32 %s82, 7
        %s85 = sand.u32 %s82, 127
        %s86 = sadd.s32 %s84, 1
        %s87 = smul.u32 %s86, 128
        %s88 = sshra.s32 %s82, 7
        %s89 = sand.u32 %s82, 127
        %s90 = sadd.s32 %s87, %s89
        %s91 = sld [smem:[#allocation6 + %s90]]
        %s92 = sadd.s32 %s75, %s77
        %s93 = smul.addr %s83, 16
        %s94 = scalar_lea.hbm %s1, %s93
        %s95 = scalar_lea.vmem [#allocation2], %s92
        %s96 = scalar_lea.sflag [#allocation4], %s73
        // Predicated region
        $region32: #{tpu_custom_call.1} parent=28 // pred_check
          _
        $region33: #{tpu_custom_call.1} parent=28 // pred_check_branch
          %98 = sbr.rel target = $region35
        $region34: #{tpu_custom_call.1} parent=28 // pred_region
          %99 = sst [smem:[#allocation11]] [#allocation16]
          %100 = sst [smem:[#allocation12]] [#allocation15]
        $region35: #{tpu_custom_call.1} parent=28 // pred_fallthru
          _
        %102 = shalt.err (0)
        %s104 = sshll.u32 %s95, 4
        %s105 = int_to_ptr.vmem [resolvable:$true] %s104
        %107 = dma.hbm_to_vmem [thread:$0]  %s94, 16, %s105, %s96
        %s108 = smul.addr %s91, 16
        %s109 = scalar_lea.hbm %s1, %s108
        %s110 = scalar_lea.vmem [#allocation3], %s92
        %s111 = sadd.s32 %s73, 2
        %s112 = scalar_lea.sflag [#allocation4], %s111
        // Predicated region
        $region36: #{tpu_custom_call.1} parent=28 // pred_check
          _
        $region37: #{tpu_custom_call.1} parent=28 // pred_check_branch
          %114 = sbr.rel target = $region39
        $region38: #{tpu_custom_call.1} parent=28 // pred_region
          %115 = sst [smem:[#allocation11]] [#allocation18]
          %116 = sst [smem:[#allocation12]] [#allocation17]
        $region39: #{tpu_custom_call.1} parent=28 // pred_fallthru
          _
        %118 = shalt.err (0)
        %s120 = sshll.u32 %s110, 4
        %s121 = int_to_ptr.vmem [resolvable:$true] %s120
        %123 = dma.hbm_to_vmem [thread:$0]  %s109, 16, %s121, %s112
      $region29: #{tpu_custom_call.1} parent=23 // loop_footer
        %s81 = sadd.s32 1, %s77
      $region30: #{tpu_custom_call.1} parent=23 // loop_footer_branch
        %76 = sbr.rel target = $region26
      $region31: #{tpu_custom_call.1} parent=23 // loop_exit
        _
    $region24: #{tpu_custom_call.1} parent=1 // pred_fallthru
      _
    %s124 = smul.u32 %s19, 8
    loop: start=0, step=1, limit=8
    $region40: #{tpu_custom_call.1} parent=1 // loop_pre_header
      _
    $region41: #{tpu_custom_call.1} parent=1 // loop_header
      %s126 = sphi 0, %s130
      %p127 = scmp.ge.s32.totalorder %s126, 8
    $region42: #{tpu_custom_call.1} parent=1 // loop_header_branch
      %129 = sbr.rel (%p127) target = $region46
    $region43: #{tpu_custom_call.1} parent=1 // loop_body
      %s131 = scalar_lea.sflag [#allocation4], %s19
      %s132 = smul.u32 1, 1
      %s133 = sshll.u32 %s132, 4
      %134 = dma.done %s131, %s133
      %s135 = sadd.s32 %s19, 2
      %s136 = scalar_lea.sflag [#allocation4], %s135
      %s137 = sshll.u32 %s132, 4
      %138 = dma.done %s136, %s137
    $region44: #{tpu_custom_call.1} parent=1 // loop_footer
      %s130 = sadd.s32 1, %s126
    $region45: #{tpu_custom_call.1} parent=1 // loop_footer_branch
      %125 = sbr.rel target = $region41
    $region46: #{tpu_custom_call.1} parent=1 // loop_exit
      _
    %s139 = scalar_lea.vmem [#allocation2], %s124
    %v140 = vld [vmem:[%s139] sm:$0xff]
    %s141 = scalar_lea.vmem [#allocation3], %s124
    %v142 = vld [vmem:[%s141] sm:$0xff]
    %v143 = vmul.f32 %v140, %v142
    %144 = vadd.xlane.f32.xlu0 %v143
    %v145 = vpop.xlane.xlu0 %144
    %v146 = vmin.f32 %v145, 0.0
    %v147 = vand.u32 2147483647, %v145
    %v148 = vsub.f32 0.0, %v147
    %v149 = vmul.f32 %v148, 1.442695
    %v150 = vpow.pop %v149
    %v151 = vadd.f32 %v150, 1.0
    %v152 = vlog2.pop %v151
    %v153 = vmul.f32 %v152, 0.6931472
    %v154 = vmul.f32 -0.5, %v150
    %v155 = vadd.f32 %v154, 1.0
    %v156 = vmul.f32 %v155, %v150
    %v157 = vand.u32 2147483647, %v150
    %vm158 = vcmp.lt.f32.partialorder %v157, 0.0004427343
    %v159 = vsel %vm158, %v156, %v153
    %v160 = vsub.f32 %v146, %v159
    %v162 = vlaneseq
    %v163 = vand.u32 %v162, 127
    %v164 = vlaneseq
    %v165 = vshrl.u32 %v164, 7
    %v166 = vsub.s32 %v163, %v165
    %v167 = vrot.slane %v160, %v166
    %vm169 = vcmask 57344
    %170 = vst.msk [vmem:[#allocation7] sm:$0x1] %vm169, %v167
    // Predicated region
    $region47: #{tpu_custom_call.1} parent=1 // pred_check
      _
    $region48: #{tpu_custom_call.1} parent=1 // pred_check_branch
      %172 = sbr.rel (0) target = $region50
    $region49: #{tpu_custom_call.1} parent=1 // pred_region
      %s174 = ssub.s32 16, 16
      %175 = vsyncadd [#allocation8], %s174
      %s177 = sshll.u32 [#allocation7], 4
      %s178 = int_to_ptr.vmem [resolvable:$true] %s177
      %180 = dma.vmem_to_hbm [thread:$0]  %s178, 16, %s2, [#allocation8]
    $region50: #{tpu_custom_call.1} parent=1 // pred_fallthru
      _
    // Predicated region
    $region51: #{tpu_custom_call.1} parent=1 // pred_check
      _
    $region52: #{tpu_custom_call.1} parent=1 // pred_check_branch
      %182 = sbr.rel (0) target = $region54
    $region53: #{tpu_custom_call.1} parent=1 // pred_region
      %183 = dma.done [#allocation8], 16
    $region54: #{tpu_custom_call.1} parent=1 // pred_fallthru
      _
    %184 = vsyncpa [#allocation8], 1
  %185 = vsyncmov [#allocation4]
  %s186 = vpop.sfrf %185
  %p187 = scmp.eq.s32.totalorder %s186, 0
  %p188 = pneg %p187
  %190 = shalt.err (%p188)
  %s191 = scalar_lea.sflag [#allocation4], 1
  %192 = vsyncmov %s191
  %s193 = vpop.sfrf %192
  %p194 = scmp.eq.s32.totalorder %s193, 0
  %p195 = pneg %p194
  %197 = shalt.err (%p195)
  %s198 = scalar_lea.sflag [#allocation4], 2
  %199 = vsyncmov %s198
  %s200 = vpop.sfrf %199
  %p201 = scmp.eq.s32.totalorder %s200, 0
  %p202 = pneg %p201
  %204 = shalt.err (%p202)
  %s205 = scalar_lea.sflag [#allocation4], 3
  %206 = vsyncmov %s205
  %s207 = vpop.sfrf %206
  %p208 = scmp.eq.s32.totalorder %s207, 0
  %p209 = pneg %p208
  %211 = shalt.err (%p209)

</llo_original>
